<compile_context>
chip_gen: v6e
topology: v6e:2x2x1
jax: 0.10.0
libtpu: 0.0.40
codegen_flags: <defaults>
</compile_context>

<pallas_src>
import functools

import jax
import jax.numpy as jnp
from jax import lax
from jax.experimental import pallas as pl
from jax.experimental.pallas import tpu as pltpu


# ---------------------------------------------------------------------------
# Kernel: one grid step == one block of T_BLK decode timesteps.
# ---------------------------------------------------------------------------
def _cscru_block_kernel(x_ref, s0_ref, f0_ref, wx_ref, ws_ref, bx_ref, bs_ref,
                        out_ref, s_scr, f_scr, gx_scr, *, unroll):
    blk = pl.program_id(0)
    t_blk, b, i = x_ref.shape
    h = s_scr.shape[-1]

    # Initialize the recurrent carries from the provided initial state (first block).
    @pl.when(blk == 0)
    def _():
        s_scr[...] = s0_ref[...]
        f_scr[...] = f0_ref[...]

    # ---- Phase 0: x-side projection for the whole block (no recurrence). ----
    # One large MXU matmul (M = T_BLK * B) instead of one tiny matmul per step.
    x_flat = x_ref[...].reshape(t_blk * b, i)
    gx_flat = jnp.dot(x_flat, wx_ref[...], preferred_element_type=jnp.float32)
    gx_scr[...] = (gx_flat + bx_ref[...]).reshape(t_blk, b, 4 * h)

    # ---- Loop-invariant values hoisted out of the serial recurrence. ----
    ws = ws_ref[...]                                       # (H, 2H), VMEM-resident
    bs = jnp.broadcast_to(bs_ref[...], (b, 2 * h))         # broadcast once, not per step
    pad = jnp.zeros((b, h), jnp.float32)                   # zero pad vreg built once

    def step(t, carry):
        sp, fp = carry                                     # (B, H) each, live in vregs
        gx = gx_scr[t]                                     # (B, 4H) precomputed x-side gates

        # Only recurrent matmul left on the serial path.
        gs = jnp.dot(sp, ws, preferred_element_type=jnp.float32) + bs   # (B, 2H)

        sig_x = jax.nn.sigmoid(gx[:, 2 * h:4 * h])         # [f_s | o_s] in one 64-lane EUP call
        sig_s = jax.nn.sigmoid(gs)                         # [f_f | o_f] in one 64-lane EUP call

        xs = gx[:, 0:h]
        xw = gx[:, h:2 * h]
        f_s = sig_x[:, 0:h]
        o_s = sig_x[:, h:2 * h]
        f_f = sig_s[:, 0:h]
        o_f = sig_s[:, h:2 * h]

        one_minus_fs = 1.0 - f_s
        s = xs * one_minus_fs + sp * f_s
        f = sp * one_minus_fs + fp * f_f

        sf = jnp.concatenate([s, f], axis=-1)              # (B, 2H), reused for output pack
        tanh_sf = jnp.tanh(sf)                             # both tanh in one 64-lane EUP call
        hh = tanh_sf[:, 0:h] * o_s + tanh_sf[:, h:2 * h] * o_f + xw

        # Single lane-dense unmasked 128-lane store: [s | f | h | pad]
        out_ref[t] = jnp.concatenate([sf, hh, pad], axis=-1)
        return (s, f)

    init = (s_scr[...], f_scr[...])
    s_fin, f_fin = lax.fori_loop(0, t_blk, step, init,
                                 unroll=min(unroll, t_blk))

    # Carry state to the next T-block.
    s_scr[...] = s_fin
    f_scr[...] = f_fin


# ---------------------------------------------------------------------------
# pallas_call wrapper: grid over T-blocks; weights/biases stay VMEM-resident.
# ---------------------------------------------------------------------------
def _run_blocks(x_seq, s0, f0, wx, ws, bx, bs, t_blk, unroll):
    t_pad, b, i = x_seq.shape
    h = s0.shape[-1]
    n_blocks = t_pad // t_blk

    grid_spec = pltpu.PrefetchScalarGridSpec(
        num_scalar_prefetch=0,
        grid=(n_blocks,),
        in_specs=[
            pl.BlockSpec((t_blk, b, i), lambda k: (k, 0, 0)),    # x block
            pl.BlockSpec((b, h), lambda k: (0, 0)),              # s0 (resident)
            pl.BlockSpec((b, h), lambda k: (0, 0)),              # f0 (resident)
            pl.BlockSpec((i, 4 * h), lambda k: (0, 0)),          # Wx (resident)
            pl.BlockSpec((h, 2 * h), lambda k: (0, 0)),          # Ws (resident)
            pl.BlockSpec((1, 4 * h), lambda k: (0, 0)),          # bx (resident)
            pl.BlockSpec((1, 2 * h), lambda k: (0, 0)),          # bs (resident)
        ],
        out_specs=pl.BlockSpec((t_blk, b, 4 * h), lambda k: (k, 0, 0)),
        scratch_shapes=[
            pltpu.VMEM((b, h), jnp.float32),                     # s carry across blocks
            pltpu.VMEM((b, h), jnp.float32),                     # f carry across blocks
            pltpu.VMEM((t_blk, b, 4 * h), jnp.float32),          # precomputed gx block
        ],
    )

    return pl.pallas_call(
        functools.partial(_cscru_block_kernel, unroll=unroll),
        out_shape=jax.ShapeDtypeStruct((t_pad, b, 4 * h), jnp.float32),
        grid_spec=grid_spec,
        compiler_params=pltpu.CompilerParams(
            dimension_semantics=("arbitrary",)),                 # sequential recurrence
    )(x_seq, s0, f0, wx, ws, bx, bs)


def fuse_params(p):
    """Concatenate the six weight matrices / four biases into fused operands (once)."""
    h = p["wf_f"].shape[0]
    wx = jnp.concatenate([p["w_s"], p["w"], p["wf_s"], p["wo_s"]], axis=1)   # (I, 4H)
    ws = jnp.concatenate([p["wf_f"], p["wo_f"]], axis=1)                     # (H, 2H)
    zero = jnp.zeros((h,), jnp.float32)
    bx = jnp.concatenate([zero, zero, p["bf_s"], p["bo_s"]]).reshape(1, 4 * h)
    bs = jnp.concatenate([p["bf_f"], p["bo_f"]]).reshape(1, 2 * h)
    return wx, ws, bx, bs


def unpack_sfh(packed, hidden_size):
    """Split the packed [s | f | h | pad] slab into (s, f, h)."""
    h = hidden_size
    return packed[..., 0:h], packed[..., h:2 * h], packed[..., 2 * h:3 * h]


@functools.partial(jax.jit, static_argnames=("t_block", "unroll"))
def lstmcell_sequence_packed(x_seq, s0, f0, params, *, t_block=256, unroll=4):
    """Fused decode loop: T cell steps with the time loop inside the kernel.

    x_seq: (T, B, I); s0, f0: (B, H).
    Returns the packed slab (T, B, 4H) = [s | f | h | pad] (use unpack_sfh)."""
    t, b, i = x_seq.shape
    wx, ws, bx, bs = fuse_params(params)

    t_blk = max(1, min(int(t_block), t))
    t_pad = int(pl.cdiv(t, t_blk)) * t_blk
    if t_pad != t:
        x_seq = jnp.concatenate(
            [x_seq, jnp.zeros((t_pad - t, b, i), x_seq.dtype)], axis=0)

    packed = _run_blocks(x_seq, s0, f0, wx, ws, bx, bs, t_blk, unroll)
    return packed[:t]


@jax.jit
def lstmcell_forward(x, sprev, fprev, params, s_prev=None, f_prev=None):
    """Single-step module forward (matches the PyTorch Lstmcell.forward).
    x: (B, 1, I); sprev, fprev: (B, 1, H).  Returns (s, f, h), each (B, 1, H)."""
    if s_prev is None:
        s_prev = sprev
    if f_prev is None:
        f_prev = fprev
    b, one, i = x.shape
    assert one == 1
    h = s_prev.shape[-1]

    packed = lstmcell_sequence_packed(
        x.reshape(1, b, i), s_prev.reshape(b, h), f_prev.reshape(b, h),
        params, t_block=1, unroll=1)                        # (1, B, 4H)
    s, f, hh = unpack_sfh(packed[0], h)
    return s.reshape(b, 1, h), f.reshape(b, 1, h), hh.reshape(b, 1, h)


# ---------------------------------------------------------------------------
# Init + pure-JAX reference (mirrors the PyTorch forward).
# ---------------------------------------------------------------------------
def xavier_uniform(key, shape, dtype=jnp.float32):
    fan_in, fan_out = shape
    limit = (6.0 / (fan_in + fan_out)) ** 0.5
    return jax.random.uniform(key, shape, dtype, minval=-limit, maxval=limit)


def init_params(key, input_size, hidden_size):
    ks = jax.random.split(key, 6)
    return {
        "w_s": xavier_uniform(ks[0], (input_size, hidden_size)),
        "w": xavier_uniform(ks[1], (input_size, hidden_size)),
        "wf_s": xavier_uniform(ks[2], (input_size, hidden_size)),
        "wf_f": xavier_uniform(ks[3], (hidden_size, hidden_size)),
        "wo_s": xavier_uniform(ks[4], (input_size, hidden_size)),
        "wo_f": xavier_uniform(ks[5], (hidden_size, hidden_size)),
        "bf_s": jnp.zeros((hidden_size,), jnp.float32),
        "bf_f": jnp.zeros((hidden_size,), jnp.float32),
        "bo_s": jnp.zeros((hidden_size,), jnp.float32),
        "bo_f": jnp.zeros((hidden_size,), jnp.float32),
    }


_HI = jax.lax.Precision.HIGHEST


def reference_forward(x, sprev, fprev, p):
    xs = jnp.matmul(x, p["w_s"], precision=_HI)
    f_s = jax.nn.sigmoid(jnp.matmul(x, p["wf_s"], precision=_HI) + p["bf_s"])
    f_f = jax.nn.sigmoid(jnp.matmul(sprev, p["wf_f"], precision=_HI) + p["bf_f"])
    o_s = jax.nn.sigmoid(jnp.matmul(x, p["wo_s"], precision=_HI) + p["bo_s"])
    o_f = jax.nn.sigmoid(jnp.matmul(sprev, p["wo_f"], precision=_HI) + p["bo_f"])
    s = xs * (1 - f_s) + sprev * f_s
    f = sprev * (1 - f_s) + fprev * f_f
    h = (jnp.tanh(s) * o_s + jnp.tanh(f) * o_f
         + jnp.matmul(x, p["w"], precision=_HI))
    return s, f, h


if __name__ == "__main__":
    B, INPUT_SIZE, HIDDEN, T = 8, 16, 32, 40

    key = jax.random.PRNGKey(0)
    kp, kx, ks, kf, kb1, kb2, kb3, kb4, kxs = jax.random.split(key, 9)

    params = init_params(kp, INPUT_SIZE, HIDDEN)
    # Non-zero biases so the fused-bias path is actually exercised.
    params["bf_s"] = 0.1 * jax.random.normal(kb1, (HIDDEN,), jnp.float32)
    params["bf_f"] = 0.1 * jax.random.normal(kb2, (HIDDEN,), jnp.float32)
    params["bo_s"] = 0.1 * jax.random.normal(kb3, (HIDDEN,), jnp.float32)
    params["bo_f"] = 0.1 * jax.random.normal(kb4, (HIDDEN,), jnp.float32)

    ATOL = RTOL = 1e-4

    # --- single-step module forward ---
    x = jax.random.normal(kx, (B, 1, INPUT_SIZE), jnp.float32)
    sprev = jax.random.normal(ks, (B, 1, HIDDEN), jnp.float32)
    fprev = jax.random.normal(kf, (B, 1, HIDDEN), jnp.float32)

    s, f, h = lstmcell_forward(x, sprev, fprev, params)
    jax.block_until_ready((s, f, h))
    s_ref, f_ref, h_ref = reference_forward(x, sprev, fprev, params)
    assert jnp.allclose(s, s_ref, atol=ATOL, rtol=RTOL)
    assert jnp.allclose(f, f_ref, atol=ATOL, rtol=RTOL)
    assert jnp.allclose(h, h_ref, atol=ATOL, rtol=RTOL)

    # --- fused multi-step decode loop (time loop inside the kernel) ---
    x_seq = jax.random.normal(kxs, (T, B, INPUT_SIZE), jnp.float32)
    s0 = sprev.reshape(B, HIDDEN)
    f0 = fprev.reshape(B, HIDDEN)

    # Small T-block so multiple grid blocks + T-padding are exercised (40 -> 3 x 16).
    packed_small = lstmcell_sequence_packed(x_seq, s0, f0, params,
                                            t_block=16, unroll=4)
    # Default (large) T-block: clamps to a single block covering all of T.
    packed_big = lstmcell_sequence_packed(x_seq, s0, f0, params)
    jax.block_until_ready((packed_small, packed_big))

    s_sm, f_sm, h_sm = unpack_sfh(packed_small, HIDDEN)
    s_bg, f_bg, h_bg = unpack_sfh(packed_big, HIDDEN)

    # Reference: unroll the cell step-by-step, carrying s/f.
    s_c, f_c = s0, f0
    for t in range(T):
        s_r, f_r, h_r = reference_forward(x_seq[t], s_c, f_c, params)
        for got_s, got_f, got_h in ((s_sm[t], f_sm[t], h_sm[t]),
                                    (s_bg[t], f_bg[t], h_bg[t])):
            assert jnp.allclose(got_s, s_r, atol=ATOL, rtol=RTOL)
            assert jnp.allclose(got_f, f_r, atol=ATOL, rtol=RTOL)
            assert jnp.allclose(got_h, h_r, atol=ATOL, rtol=RTOL)
        s_c, f_c = s_r, f_r

    print("KERNEL_OK")
</pallas_src>

<mosaic_0001>
module attributes {stable_mosaic.version = 11 : i64} {
  func.func @_cscru_block_kernel(%arg0: i32, %arg1: memref<1x8x16xf32, #tpu.memory_space<vmem>>, %arg2: memref<8x32xf32, #tpu.memory_space<vmem>>, %arg3: memref<8x32xf32, #tpu.memory_space<vmem>>, %arg4: memref<16x128xf32, #tpu.memory_space<vmem>>, %arg5: memref<32x64xf32, #tpu.memory_space<vmem>>, %arg6: memref<1x128xf32, #tpu.memory_space<vmem>>, %arg7: memref<1x64xf32, #tpu.memory_space<vmem>>, %arg8: memref<1x8x128xf32, #tpu.memory_space<vmem>>, %arg9: memref<8x32xf32, #tpu.memory_space<vmem>>, %arg10: memref<8x32xf32, #tpu.memory_space<vmem>>, %arg11: memref<1x8x128xf32, #tpu.memory_space<vmem>>) attributes {dimension_semantics = [#tpu.dimension_semantics<arbitrary>], iteration_bounds = array<i64: 1>, scalar_prefetch = 0 : i64, scratch_operands = 3 : i64, tpu.core_type = #tpu.core_type<tc>, window_params = [{transform_indices = @transform_0, window_bounds = array<i64: 1, 8, 16>}, {pipeline_mode = #tpu.pipeline_mode<synchronous>, transform_indices = @transform_1, window_bounds = array<i64: 8, 32>}, {pipeline_mode = #tpu.pipeline_mode<synchronous>, transform_indices = @transform_2, window_bounds = array<i64: 8, 32>}, {pipeline_mode = #tpu.pipeline_mode<synchronous>, transform_indices = @transform_3, window_bounds = array<i64: 16, 128>}, {pipeline_mode = #tpu.pipeline_mode<synchronous>, transform_indices = @transform_4, window_bounds = array<i64: 32, 64>}, {pipeline_mode = #tpu.pipeline_mode<synchronous>, transform_indices = @transform_5, window_bounds = array<i64: 1, 128>}, {pipeline_mode = #tpu.pipeline_mode<synchronous>, transform_indices = @transform_6, window_bounds = array<i64: 1, 64>}, {transform_indices = @transform_7, window_bounds = array<i64: 1, 8, 128>}]} {
    %c0_i32 = arith.constant 0 : i32
    %0 = arith.cmpi eq, %arg0, %c0_i32 : i32
    %1 = arith.extui %0 : i1 to i32
    %c0_i32_0 = arith.constant 0 : i32
    %2 = arith.cmpi ne, %1, %c0_i32_0 : i32
    scf.if %2 {
      %c0_32 = arith.constant 0 : index
      %c0_33 = arith.constant 0 : index
      %64 = vector.load %arg2[%c0_32, %c0_33] : memref<8x32xf32, #tpu.memory_space<vmem>>, vector<8x32xf32>
      %c0_34 = arith.constant 0 : index
      %c0_35 = arith.constant 0 : index
      %65 = vector.load %arg9[%c0_34, %c0_35] : memref<8x32xf32, #tpu.memory_space<vmem>>, vector<8x32xf32>
      tpu.vector_store %arg9[%c0_34, %c0_35], %64 {strides = array<i32>} : memref<8x32xf32, #tpu.memory_space<vmem>>, vector<8x32xf32>,
      %c0_36 = arith.constant 0 : index
      %c0_37 = arith.constant 0 : index
      %66 = vector.load %arg3[%c0_36, %c0_37] : memref<8x32xf32, #tpu.memory_space<vmem>>, vector<8x32xf32>
      %c0_38 = arith.constant 0 : index
      %c0_39 = arith.constant 0 : index
      %67 = vector.load %arg10[%c0_38, %c0_39] : memref<8x32xf32, #tpu.memory_space<vmem>>, vector<8x32xf32>
      tpu.vector_store %arg10[%c0_38, %c0_39], %66 {strides = array<i32>} : memref<8x32xf32, #tpu.memory_space<vmem>>, vector<8x32xf32>,
    } else {
    }
    %c0 = arith.constant 0 : index
    %c0_1 = arith.constant 0 : index
    %c0_2 = arith.constant 0 : index
    %3 = vector.load %arg1[%c0, %c0_1, %c0_2] : memref<1x8x16xf32, #tpu.memory_space<vmem>>, vector<1x8x16xf32>
    %4 = vector.shape_cast %3 : vector<1x8x16xf32> to vector<8x16xf32>
    %c0_3 = arith.constant 0 : index
    %c0_4 = arith.constant 0 : index
    %5 = vector.load %arg4[%c0_3, %c0_4] : memref<16x128xf32, #tpu.memory_space<vmem>>, vector<16x128xf32>
    %cst = arith.constant dense<0.000000e+00> : vector<8x128xf32>
    %6 = tpu.matmul %4, %5, %cst {dimension_numbers = #tpu.dot_dimension_numbers<[1], [0], [0], [1], [0, 0, 1, 1], [], []>} : vector<8x16xf32>, vector<16x128xf32>, vector<8x128xf32> -> vector<8x128xf32>
    %c0_5 = arith.constant 0 : index
    %c0_6 = arith.constant 0 : index
    %7 = vector.load %arg6[%c0_5, %c0_6] : memref<1x128xf32, #tpu.memory_space<vmem>>, vector<1x128xf32>
    %8 = vector.broadcast %7 : vector<1x128xf32> to vector<8x128xf32>
    %9 = arith.addf %6, %8 : vector<8x128xf32>
    %10 = vector.shape_cast %9 : vector<8x128xf32> to vector<1x8x128xf32>
    %c0_7 = arith.constant 0 : index
    %c0_8 = arith.constant 0 : index
    %c0_9 = arith.constant 0 : index
    %11 = vector.load %arg11[%c0_7, %c0_8, %c0_9] : memref<1x8x128xf32, #tpu.memory_space<vmem>>, vector<1x8x128xf32>
    tpu.vector_store %arg11[%c0_7, %c0_8, %c0_9], %10 {strides = array<i32>} : memref<1x8x128xf32, #tpu.memory_space<vmem>>, vector<1x8x128xf32>,
    %c0_10 = arith.constant 0 : index
    %c0_11 = arith.constant 0 : index
    %12 = vector.load %arg5[%c0_10, %c0_11] : memref<32x64xf32, #tpu.memory_space<vmem>>, vector<32x64xf32>
    %c0_12 = arith.constant 0 : index
    %c0_13 = arith.constant 0 : index
    %13 = vector.load %arg7[%c0_12, %c0_13] : memref<1x64xf32, #tpu.memory_space<vmem>>, vector<1x64xf32>
    %14 = vector.shape_cast %13 : vector<1x64xf32> to vector<1x64xf32>
    %15 = vector.broadcast %14 : vector<1x64xf32> to vector<8x64xf32>
    %cst_14 = arith.constant 0.000000e+00 : f32
    %16 = vector.broadcast %cst_14 : f32 to vector<8x32xf32>
    %c0_15 = arith.constant 0 : index
    %c0_16 = arith.constant 0 : index
    %17 = vector.load %arg9[%c0_15, %c0_16] : memref<8x32xf32, #tpu.memory_space<vmem>>, vector<8x32xf32>
    %c0_17 = arith.constant 0 : index
    %c0_18 = arith.constant 0 : index
    %18 = vector.load %arg10[%c0_17, %c0_18] : memref<8x32xf32, #tpu.memory_space<vmem>>, vector<8x32xf32>
    %c0_i32_19 = arith.constant 0 : i32
    %19 = arith.index_cast %c0_i32_19 : i32 to index
    %c0_20 = arith.constant 0 : index
    %c0_21 = arith.constant 0 : index
    %20 = vector.load %arg11[%19, %c0_20, %c0_21] : memref<1x8x128xf32, #tpu.memory_space<vmem>>, vector<1x8x128xf32>
    %21 = vector.shape_cast %20 : vector<1x8x128xf32> to vector<8x128xf32>
    %cst_22 = arith.constant dense<0.000000e+00> : vector<8x64xf32>
    %22 = tpu.matmul %17, %12, %cst_22 {dimension_numbers = #tpu.dot_dimension_numbers<[1], [0], [0], [1], [0, 0, 1, 1], [], []>} : vector<8x32xf32>, vector<32x64xf32>, vector<8x64xf32> -> vector<8x64xf32>
    %23 = arith.addf %22, %15 : vector<8x64xf32>
    %24 = vector.extract_strided_slice %21 {offsets = [0, 64], sizes = [8, 64], strides = [1, 1]} : vector<8x128xf32> to vector<8x64xf32>
    %25 = arith.negf %24 : vector<8x64xf32>
    %26 = math.exp %25 : vector<8x64xf32>
    %cst_23 = arith.constant 1.000000e+00 : f32
    %27 = vector.broadcast %cst_23 : f32 to vector<8x64xf32>
    %28 = arith.addf %27, %26 : vector<8x64xf32>
    %29 = arith.divf %27, %28 : vector<8x64xf32>
    %30 = arith.negf %23 : vector<8x64xf32>
    %31 = math.exp %30 : vector<8x64xf32>
    %cst_24 = arith.constant 1.000000e+00 : f32
    %32 = vector.broadcast %cst_24 : f32 to vector<8x64xf32>
    %33 = arith.addf %32, %31 : vector<8x64xf32>
    %34 = arith.divf %32, %33 : vector<8x64xf32>
    %35 = vector.extract_strided_slice %21 {offsets = [0, 0], sizes = [8, 32], strides = [1, 1]} : vector<8x128xf32> to vector<8x32xf32>
    %36 = vector.extract_strided_slice %21 {offsets = [0, 32], sizes = [8, 32], strides = [1, 1]} : vector<8x128xf32> to vector<8x32xf32>
    %37 = vector.extract_strided_slice %29 {offsets = [0, 0], sizes = [8, 32], strides = [1, 1]} : vector<8x64xf32> to vector<8x32xf32>
    %38 = vector.extract_strided_slice %29 {offsets = [0, 32], sizes = [8, 32], strides = [1, 1]} : vector<8x64xf32> to vector<8x32xf32>
    %39 = vector.extract_strided_slice %34 {offsets = [0, 0], sizes = [8, 32], strides = [1, 1]} : vector<8x64xf32> to vector<8x32xf32>
    %40 = vector.extract_strided_slice %34 {offsets = [0, 32], sizes = [8, 32], strides = [1, 1]} : vector<8x64xf32> to vector<8x32xf32>
    %cst_25 = arith.constant 1.000000e+00 : f32
    %41 = vector.broadcast %cst_25 : f32 to vector<8x32xf32>
    %42 = arith.subf %41, %37 : vector<8x32xf32>
    %43 = arith.mulf %35, %42 : vector<8x32xf32>
    %44 = arith.mulf %17, %37 : vector<8x32xf32>
    %45 = arith.addf %43, %44 : vector<8x32xf32>
    %46 = arith.mulf %17, %42 : vector<8x32xf32>
    %47 = arith.mulf %18, %39 : vector<8x32xf32>
    %48 = arith.addf %46, %47 : vector<8x32xf32>
    %49 = tpu.concatenate %45, %48 in 1 : vector<8x32xf32>, vector<8x32xf32> -> vector<8x64xf32>
    %50 = math.tanh %49 : vector<8x64xf32>
    %51 = vector.extract_strided_slice %50 {offsets = [0, 0], sizes = [8, 32], strides = [1, 1]} : vector<8x64xf32> to vector<8x32xf32>
    %52 = arith.mulf %51, %38 : vector<8x32xf32>
    %53 = vector.extract_strided_slice %50 {offsets = [0, 32], sizes = [8, 32], strides = [1, 1]} : vector<8x64xf32> to vector<8x32xf32>
    %54 = arith.mulf %53, %40 : vector<8x32xf32>
    %55 = arith.addf %52, %54 : vector<8x32xf32>
    %56 = arith.addf %55, %36 : vector<8x32xf32>
    %57 = tpu.concatenate %49, %56, %16 in 1 : vector<8x64xf32>, vector<8x32xf32>, vector<8x32xf32> -> vector<8x128xf32>
    %58 = arith.index_cast %c0_i32_19 : i32 to index
    %c0_26 = arith.constant 0 : index
    %c0_27 = arith.constant 0 : index
    %59 = vector.load %arg8[%58, %c0_26, %c0_27] : memref<1x8x128xf32, #tpu.memory_space<vmem>>, vector<1x8x128xf32>
    %60 = vector.shape_cast %59 : vector<1x8x128xf32> to vector<8x128xf32>
    %61 = vector.shape_cast %57 : vector<8x128xf32> to vector<1x8x128xf32>
    tpu.vector_store %arg8[%58, %c0_26, %c0_27], %61 {strides = array<i32>} : memref<1x8x128xf32, #tpu.memory_space<vmem>>, vector<1x8x128xf32>,
    %c1_i32 = arith.constant 1 : i32
    %c0_28 = arith.constant 0 : index
    %c0_29 = arith.constant 0 : index
    %62 = vector.load %arg9[%c0_28, %c0_29] : memref<8x32xf32, #tpu.memory_space<vmem>>, vector<8x32xf32>
    tpu.vector_store %arg9[%c0_28, %c0_29], %45 {strides = array<i32>} : memref<8x32xf32, #tpu.memory_space<vmem>>, vector<8x32xf32>,
    %c0_30 = arith.constant 0 : index
    %c0_31 = arith.constant 0 : index
    %63 = vector.load %arg10[%c0_30, %c0_31] : memref<8x32xf32, #tpu.memory_space<vmem>>, vector<8x32xf32>
    tpu.vector_store %arg10[%c0_30, %c0_31], %48 {strides = array<i32>} : memref<8x32xf32, #tpu.memory_space<vmem>>, vector<8x32xf32>,
    return
  }
  func.func @transform_0(%arg0: i32) -> (i32, i32, i32) {
    %c0_i32 = arith.constant 0 : i32
    %c0_i32_0 = arith.constant 0 : i32
    %c0_i32_1 = arith.constant 0 : i32
    return %arg0, %c0_i32, %c0_i32_0 : i32, i32, i32
  }
  func.func @transform_1(%arg0: i32) -> (i32, i32) {
    %c0_i32 = arith.constant 0 : i32
    %c0_i32_0 = arith.constant 0 : i32
    %c0_i32_1 = arith.constant 0 : i32
    return %c0_i32, %c0_i32_0 : i32, i32
  }
  func.func @transform_2(%arg0: i32) -> (i32, i32) {
    %c0_i32 = arith.constant 0 : i32
    %c0_i32_0 = arith.constant 0 : i32
    %c0_i32_1 = arith.constant 0 : i32
    return %c0_i32, %c0_i32_0 : i32, i32
  }
  func.func @transform_3(%arg0: i32) -> (i32, i32) {
    %c0_i32 = arith.constant 0 : i32
    %c0_i32_0 = arith.constant 0 : i32
    %c0_i32_1 = arith.constant 0 : i32
    return %c0_i32, %c0_i32_0 : i32, i32
  }
  func.func @transform_4(%arg0: i32) -> (i32, i32) {
    %c0_i32 = arith.constant 0 : i32
    %c0_i32_0 = arith.constant 0 : i32
    %c0_i32_1 = arith.constant 0 : i32
    return %c0_i32, %c0_i32_0 : i32, i32
  }
  func.func @transform_5(%arg0: i32) -> (i32, i32) {
    %c0_i32 = arith.constant 0 : i32
    %c0_i32_0 = arith.constant 0 : i32
    %c0_i32_1 = arith.constant 0 : i32
    return %c0_i32, %c0_i32_0 : i32, i32
  }
  func.func @transform_6(%arg0: i32) -> (i32, i32) {
    %c0_i32 = arith.constant 0 : i32
    %c0_i32_0 = arith.constant 0 : i32
    %c0_i32_1 = arith.constant 0 : i32
    return %c0_i32, %c0_i32_0 : i32, i32
  }
  func.func @transform_7(%arg0: i32) -> (i32, i32, i32) {
    %c0_i32 = arith.constant 0 : i32
    %c0_i32_0 = arith.constant 0 : i32
    %c0_i32_1 = arith.constant 0 : i32
    return %arg0, %c0_i32, %c0_i32_0 : i32, i32, i32
  }
}

</mosaic_0001>

<llo_original>
// kernel: lstmcell_sequence_packed.1
$region0: #{lstmcell_sequence_packed.1}
  #allocation0 [shape = 'u32[]', space=smem, size = 0x4, offset = 0x4, fixed_abs, tag = 'smem constant byte address 0x4 - core index']
  #allocation1 [shape = 'u32[144,128]{1,0:T(1,128)}', space=vmem, size = 0x12000, scoped, tag = 'internal scratch']
  #allocation2 [shape = 'f32[8,32]{1,0:T(8,128)}', space=vmem, size = 0x1000, scoped, tag = 'scratch operand']
  #allocation3 [shape = 'f32[8,32]{1,0:T(8,128)}', space=vmem, size = 0x1000, scoped, tag = 'scratch operand']
  #allocation4 [shape = 'f32[1,8,128]{2,1,0:T(8,128)}', space=vmem, size = 0x1000, scoped, tag = 'scratch operand']
  %s0 = inlined_call_operand.vmem [shape: f32[1,8,16], index: 0, kind: input, shape index: {}]
  %s1 = inlined_call_operand.vmem [shape: f32[8,32], index: 1, kind: input, shape index: {}]
  %s2 = inlined_call_operand.vmem [shape: f32[8,32], index: 2, kind: input, shape index: {}]
  %s3 = inlined_call_operand.vmem [shape: f32[16,128], index: 3, kind: input, shape index: {}]
  %s4 = inlined_call_operand.vmem [shape: f32[32,64], index: 4, kind: input, shape index: {}]
  %s5 = inlined_call_operand.vmem [shape: f32[1,128], index: 5, kind: input, shape index: {}]
  %s6 = inlined_call_operand.vmem [shape: f32[1,64], index: 6, kind: input, shape index: {}]
  %s7 = inlined_call_operand.hbm [shape: f32[1,8,128], index: 7, kind: output, shape index: {}]
  %s8 = sld [smem:[#allocation0]]
  $region42: #{lstmcell_sequence_packed.1} parent=0
    _
  %s10 = ssub.s32 1, %s8
  %s11 = scalar_select 0, %s10, %s8
  $region1: #{lstmcell_sequence_packed.1} parent=0
    #allocation5 [shape = 'u8[4096]{0}', space=vmem, size = 0x1000, scoped, tag = 'output window, operand 0, single buffered']
    #allocation6 [shape = 's32[1]{0}', space=sflag, size = 0x4, scoped, tag = 'scoped memory for lstmcell_sequence_packed.1']
    %12 = vsyncpa [#allocation6], 0
    // Predicated region
    $region2: #{lstmcell_sequence_packed.1} parent=1 // pred_check
      _
    $region3: #{lstmcell_sequence_packed.1} parent=1 // pred_check_branch
      %14 = sbr.rel (0) target = $region5
    $region4: #{lstmcell_sequence_packed.1} parent=1 // pred_region
      _
    $region5: #{lstmcell_sequence_packed.1} parent=1 // pred_fallthru
      _
    // Predicated region
    $region6: #{lstmcell_sequence_packed.1} parent=1 // pred_check
      _
    $region7: #{lstmcell_sequence_packed.1} parent=1 // pred_check_branch
      %16 = sbr.rel (0) target = $region9
    $region8: #{lstmcell_sequence_packed.1} parent=1 // pred_region
      _
    $region9: #{lstmcell_sequence_packed.1} parent=1 // pred_fallthru
      _
    // Predicated region
    $region10: #{lstmcell_sequence_packed.1} parent=1 // pred_check
      _
    $region11: #{lstmcell_sequence_packed.1} parent=1 // pred_check_branch
      %18 = sbr.rel (0) target = $region13
    $region12: #{lstmcell_sequence_packed.1} parent=1 // pred_region
      _
    $region13: #{lstmcell_sequence_packed.1} parent=1 // pred_fallthru
      _
    // Predicated region
    $region14: #{lstmcell_sequence_packed.1} parent=1 // pred_check
      _
    $region15: #{lstmcell_sequence_packed.1} parent=1 // pred_check_branch
      %20 = sbr.rel (0) target = $region17
    $region16: #{lstmcell_sequence_packed.1} parent=1 // pred_region
      _
    $region17: #{lstmcell_sequence_packed.1} parent=1 // pred_fallthru
      _
    // Predicated region
    $region18: #{lstmcell_sequence_packed.1} parent=1 // pred_check
      _
    $region19: #{lstmcell_sequence_packed.1} parent=1 // pred_check_branch
      %22 = sbr.rel (0) target = $region21
    $region20: #{lstmcell_sequence_packed.1} parent=1 // pred_region
      _
    $region21: #{lstmcell_sequence_packed.1} parent=1 // pred_fallthru
      _
    // Predicated region
    $region22: #{lstmcell_sequence_packed.1} parent=1 // pred_check
      _
    $region23: #{lstmcell_sequence_packed.1} parent=1 // pred_check_branch
      %24 = sbr.rel (0) target = $region25
    $region24: #{lstmcell_sequence_packed.1} parent=1 // pred_region
      _
    $region25: #{lstmcell_sequence_packed.1} parent=1 // pred_fallthru
      _
    // Predicated region
    $region26: #{lstmcell_sequence_packed.1} parent=1 // pred_check
      _
    $region27: #{lstmcell_sequence_packed.1} parent=1 // pred_check_branch
      %26 = sbr.rel (0) target = $region29
    $region28: #{lstmcell_sequence_packed.1} parent=1 // pred_region
      _
    $region29: #{lstmcell_sequence_packed.1} parent=1 // pred_fallthru
      _
    %p27 = scmp.eq.s32.totalorder 0, 0
    // Predicated region
    $region30: #{lstmcell_sequence_packed.1} parent=1 // pred_check
      %p28 = pneg %p27
    $region31: #{lstmcell_sequence_packed.1} parent=1 // pred_check_branch
      %30 = sbr.rel (%p28) target = $region33
    $region32: #{lstmcell_sequence_packed.1} parent=1 // pred_region
      %v31 = vld [vmem:[%s1] sm:$0xff]
      %vm32 = vcmask 261120
      %33 = vst.msk [vmem:[#allocation2] sm:$0xff] %vm32, %v31
      %v34 = vld [vmem:[%s2] sm:$0xff]
      %35 = vst.msk [vmem:[#allocation3] sm:$0xff] %vm32, %v34
    $region33: #{lstmcell_sequence_packed.1} parent=1 // pred_fallthru
      _
    %v36 = vld [vmem:[%s0] sm:$0xff]
    %v37 = vld [vmem:[%s3] sm:$0xff]
    %v38 = vld [vmem:[%s3 + $0x8] sm:$0xff]
    %v39 = vld [vmem:[%s5] sm:$0x1]
    %v41 = vlaneseq
    %v42 = vshrl.u32 %v41, 7
    %v43 = vsub.s32 0, %v42
    %v44 = vrot.slane %v39, %v43
    %vm46 = vcmask 130048
    %v48 = vsel %vm46, %v36, 0
    %50 = vmatprep.subr.mxu0 0.0
    %51 = vmatpush1.msra.mxu0 0.0
    %52 = vmatprep.subr.mxu0 0.0
    %53 = vmatpush1.msra.mxu0 0.0
    %54 = vmatprep.subr.mxu0 0.0
    %55 = vmatpush1.msra.mxu0 0.0
    %56 = vmatprep.subr.mxu0 0.0
    %57 = vmatpush1.msra.mxu0 0.0
    %58 = vmatprep.subr.mxu0 0.0
    %59 = vmatpush1.msra.mxu0 0.0
    %60 = vmatprep.subr.mxu0 0.0
    %61 = vmatpush1.msra.mxu0 0.0
    %62 = vmatprep.subr.mxu0 0.0
    %63 = vmatpush1.msra.mxu0 0.0
    %64 = vmatprep.subr.mxu0 0.0
    %65 = vmatpush1.msra.mxu0 0.0
    %66 = vmatprep.subr.mxu0 0.0
    %67 = vmatpush1.msra.mxu0 0.0
    %68 = vmatprep.subr.mxu0 0.0
    %69 = vmatpush1.msra.mxu0 0.0
    %70 = vmatprep.subr.mxu0 0.0
    %71 = vmatpush1.msra.mxu0 0.0
    %72 = vmatprep.subr.mxu0 0.0
    %73 = vmatpush1.msra.mxu0 0.0
    %74 = vmatprep.subr.mxu0 0.0
    %75 = vmatpush1.msra.mxu0 0.0
    %76 = vmatprep.subr.mxu0 0.0
    %77 = vmatpush1.msra.mxu0 0.0
    %78 = vmatprep.subr.mxu0 0.0
    %79 = vmatpush1.msra.mxu0 %v38
    %80 = vmatprep.subr.mxu0 0.0
    %81 = vmatpush1.msra.mxu0 %v37
    %82 = vmatprep.subr.mxu0 0.0
    %83 = vmatpush2.msra.mxu0 0.0
    %84 = vmatprep.subr.mxu0 0.0
    %85 = vmatpush2.msra.mxu0 0.0
    %86 = vmatprep.subr.mxu0 0.0
    %87 = vmatpush2.msra.mxu0 0.0
    %88 = vmatprep.subr.mxu0 0.0
    %89 = vmatpush2.msra.mxu0 0.0
    %90 = vmatprep.subr.mxu0 0.0
    %91 = vmatpush2.msra.mxu0 0.0
    %92 = vmatprep.subr.mxu0 0.0
    %93 = vmatpush2.msra.mxu0 0.0
    %94 = vmatprep.subr.mxu0 0.0
    %95 = vmatpush2.msra.mxu0 0.0
    %96 = vmatprep.subr.mxu0 0.0
    %97 = vmatpush2.msra.mxu0 0.0
    %98 = vmatprep.subr.mxu0 0.0
    %99 = vmatpush2.msra.mxu0 0.0
    %100 = vmatprep.subr.mxu0 0.0
    %101 = vmatpush2.msra.mxu0 0.0
    %102 = vmatprep.subr.mxu0 0.0
    %103 = vmatpush2.msra.mxu0 0.0
    %104 = vmatprep.subr.mxu0 0.0
    %105 = vmatpush2.msra.mxu0 0.0
    %106 = vmatprep.subr.mxu0 0.0
    %107 = vmatpush2.msra.mxu0 0.0
    %108 = vmatprep.subr.mxu0 0.0
    %109 = vmatpush2.msra.mxu0 0.0
    %110 = vmatprep.subr.mxu0 0.0
    %111 = vmatpush2.msra.mxu0 0.0
    %112 = vmatprep.subr.mxu0 0.0
    %113 = vmatpush2.msra.mxu0 0.0
    %114 = vmatprep.mubr.f32.mxu0 0.0
    %115 = vmatmul.mubr.f32.gmra.mxu0 %v48
    %v116 = vpop.f32.mrf.mxu0
    %v117 = vadd.f32 %v44, %v116
    %v118 = vpop.f32.mrf.mxu0
    %119 = vdwg.mxu0
    %120 = vst [vmem:[#allocation4] sm:$0xff] %v117
    %v121 = vld [vmem:[%s4] sm:$0xff]
    %v122 = vld [vmem:[%s4 + $0x8] sm:$0xff]
    %v123 = vld [vmem:[%s4 + $0x10] sm:$0xff]
    %v124 = vld [vmem:[%s4 + $0x18] sm:$0xff]
    %v125 = vld [vmem:[%s6] sm:$0x1]
    %v127 = vlaneseq
    %v128 = vshrl.u32 %v127, 7
    %v129 = vsub.s32 0, %v128
    %v130 = vrot.slane %v125, %v129
    %v132 = vld [vmem:[#allocation2] sm:$0xff]
    %v133 = vld [vmem:[#allocation3] sm:$0xff]
    %v134 = vld [vmem:[#allocation4] sm:$0xff]
    %vm135 = vcmask 261120
    %v137 = vsel %vm135, %v132, 0
    %139 = vmatprep.subr.mxu0 0.0
    %140 = vmatpush1.msra.mxu0 0.0
    %141 = vmatprep.subr.mxu0 0.0
    %142 = vmatpush1.msra.mxu0 0.0
    %143 = vmatprep.subr.mxu0 0.0
    %144 = vmatpush1.msra.mxu0 0.0
    %145 = vmatprep.subr.mxu0 0.0
    %146 = vmatpush1.msra.mxu0 0.0
    %147 = vmatprep.subr.mxu0 0.0
    %148 = vmatpush1.msra.mxu0 0.0
    %149 = vmatprep.subr.mxu0 0.0
    %150 = vmatpush1.msra.mxu0 0.0
    %151 = vmatprep.subr.mxu0 0.0
    %152 = vmatpush1.msra.mxu0 0.0
    %153 = vmatprep.subr.mxu0 0.0
    %154 = vmatpush1.msra.mxu0 0.0
    %155 = vmatprep.subr.mxu0 0.0
    %156 = vmatpush1.msra.mxu0 0.0
    %157 = vmatprep.subr.mxu0 0.0
    %158 = vmatpush1.msra.mxu0 0.0
    %159 = vmatprep.subr.mxu0 0.0
    %160 = vmatpush1.msra.mxu0 0.0
    %161 = vmatprep.subr.mxu0 0.0
    %162 = vmatpush1.msra.mxu0 0.0
    %163 = vmatprep.subr.mxu0 0.0
    %164 = vmatpush1.msra.mxu0 %v124
    %165 = vmatprep.subr.mxu0 0.0
    %166 = vmatpush1.msra.mxu0 %v123
    %167 = vmatprep.subr.mxu0 0.0
    %168 = vmatpush1.msra.mxu0 %v122
    %169 = vmatprep.subr.mxu0 0.0
    %170 = vmatpush1.msra.mxu0 %v121
    %171 = vmatprep.subr.mxu0 0.0
    %172 = vmatpush2.msra.mxu0 0.0
    %173 = vmatprep.subr.mxu0 0.0
    %174 = vmatpush2.msra.mxu0 0.0
    %175 = vmatprep.subr.mxu0 0.0
    %176 = vmatpush2.msra.mxu0 0.0
    %177 = vmatprep.subr.mxu0 0.0
    %178 = vmatpush2.msra.mxu0 0.0
    %179 = vmatprep.subr.mxu0 0.0
    %180 = vmatpush2.msra.mxu0 0.0
    %181 = vmatprep.subr.mxu0 0.0
    %182 = vmatpush2.msra.mxu0 0.0
    %183 = vmatprep.subr.mxu0 0.0
    %184 = vmatpush2.msra.mxu0 0.0
    %185 = vmatprep.subr.mxu0 0.0
    %186 = vmatpush2.msra.mxu0 0.0
    %187 = vmatprep.subr.mxu0 0.0
    %188 = vmatpush2.msra.mxu0 0.0
    %189 = vmatprep.subr.mxu0 0.0
    %190 = vmatpush2.msra.mxu0 0.0
    %191 = vmatprep.subr.mxu0 0.0
    %192 = vmatpush2.msra.mxu0 0.0
    %193 = vmatprep.subr.mxu0 0.0
    %194 = vmatpush2.msra.mxu0 0.0
    %195 = vmatprep.subr.mxu0 0.0
    %196 = vmatpush2.msra.mxu0 0.0
    %197 = vmatprep.subr.mxu0 0.0
    %198 = vmatpush2.msra.mxu0 0.0
    %199 = vmatprep.subr.mxu0 0.0
    %200 = vmatpush2.msra.mxu0 0.0
    %201 = vmatprep.subr.mxu0 0.0
    %202 = vmatpush2.msra.mxu0 0.0
    %203 = vmatprep.mubr.f32.mxu0 0.0
    %204 = vmatmul.mubr.f32.gmra.mxu0 %v137
    %v205 = vpop.f32.mrf.mxu0
    %v206 = vadd.f32 %v130, %v205
    %v207 = vpop.f32.mrf.mxu0
    %208 = vdwg.mxu0
    %v209 = vxor.u32 %v134, 2147483648
    %v210 = vmul.f32 %v209, 1.442695
    %v211 = vpow.pop %v210
    %v212 = vadd.f32 %v211, 1.0
    %v213 = vrcp.pop %v212
    %v214 = vmul.f32 1.0, %v213
    %v215 = vxor.u32 %v206, 2147483648
    %v216 = vmul.f32 %v215, 1.442695
    %v217 = vpow.pop %v216
    %v218 = vadd.f32 %v217, 1.0
    %v219 = vrcp.pop %v218
    %v220 = vmul.f32 1.0, %v219
    %v221 = vsub.f32 1.0, %v214
    %223 = vrot.lane.b32.xlu0 %v221, 64
    %v224 = vpop.permute.xlu0 %223
    %v226 = vmul.f32 %v134, %v224
    %228 = vrot.lane.b32.xlu0 %v214, 64
    %v229 = vpop.permute.xlu0 %228
    %v231 = vmul.f32 %v132, %v229
    %v232 = vadd.f32 %v226, %v231
    %v233 = vmul.f32 %v132, %v224
    %v234 = vmul.f32 %v133, %v220
    %v235 = vadd.f32 %v233, %v234
    %237 = vrot.lane.b32.xlu0 %v235, 32
    %v238 = vpop.permute.xlu0 %237
    %v240 = vsel %vm135, %v232, %v238
    %v241 = vtanh.pop %v240
    %242 = vrot.lane.b32.xlu0 %v214, 32
    %v243 = vpop.permute.xlu0 %242
    %v245 = vmul.f32 %v241, %v243
    %v246 = vmul.f32 %v241, %v220
    %248 = vrot.lane.b32.xlu0 %v246, 96
    %v249 = vpop.permute.xlu0 %248
    %v251 = vadd.f32 %v245, %v249
    %253 = vrot.lane.b32.xlu0 %v134, 96
    %v254 = vpop.permute.xlu0 %253
    %v256 = vadd.f32 %v251, %v254
    %258 = vrot.lane.b32.xlu0 %v256, 64
    %v259 = vpop.permute.xlu0 %258
    %vm261 = vcmask 523264
    %v262 = vsel %vm261, %v240, %v259
    %vm263 = vcmask 785408
    %v264 = vsel %vm263, %v262, 0.0
    %265 = vst [vmem:[#allocation5] sm:$0xff] %v264
    %266 = vst.msk [vmem:[#allocation2] sm:$0xff] %vm135, %v232
    %267 = vst.msk [vmem:[#allocation3] sm:$0xff] %vm135, %v235
    // Predicated region
    $region34: #{lstmcell_sequence_packed.1} parent=1 // pred_check
      _
    $region35: #{lstmcell_sequence_packed.1} parent=1 // pred_check_branch
      %269 = sbr.rel (0) target = $region37
    $region36: #{lstmcell_sequence_packed.1} parent=1 // pred_region
      %s271 = ssub.s32 128, 128
      %272 = vsyncadd [#allocation6], %s271
      %s274 = sshll.u32 [#allocation5], 4
      %s275 = int_to_ptr.vmem [resolvable:$true] %s274
      %277 = dma.vmem_to_hbm [thread:$0]  %s275, 128, %s7, [#allocation6]
    $region37: #{lstmcell_sequence_packed.1} parent=1 // pred_fallthru
      _
    // Predicated region
    $region38: #{lstmcell_sequence_packed.1} parent=1 // pred_check
      _
    $region39: #{lstmcell_sequence_packed.1} parent=1 // pred_check_branch
      %279 = sbr.rel (0) target = $region41
    $region40: #{lstmcell_sequence_packed.1} parent=1 // pred_region
      %280 = dma.done [#allocation6], 128
    $region41: #{lstmcell_sequence_packed.1} parent=1 // pred_fallthru
      _
    %281 = vsyncpa [#allocation6], 1

</llo_original>
